<compile_context>
chip_gen: v6e
topology: v6e:2x2x1
jax: 0.10.0
libtpu: 0.0.40
codegen_flags: <defaults>
</compile_context>

<pallas_src>
import functools

import jax
import jax.numpy as jnp
from jax.experimental import pallas as pl
from jax.experimental.pallas import tpu as pltpu


def _round_up(x, m):
    return ((x + m - 1) // m) * m


def _project_kernel(x_ref, emb_ref, o_ref, xs_scr, *, K, L, TL, W_load, left):
    # x_ref  : (1, C, L)   raw input row, resident across all L-tiles of b
    #                      (DMA'd from HBM exactly once per batch element).
    # emb_ref: (H, K)      raw embedding rows (resident for the whole grid).
    # o_ref  : (1, H, TL)  one lane-dense output L-tile.
    # xs_scr : (1, W_scr)  persistent scratch: zero-padded channel-summed signal,
    #                      xs_scr[0, left + i] = sum_c x[b, c, i], zeros elsewhere.
    t = pl.program_id(1)

    # Fused channel-sum + 'same' zero-padding, once per batch element (t == 0),
    # instead of a separate XLA sum+pad pass through HBM.
    @pl.when(t == 0)
    def _():
        xs_scr[...] = jnp.zeros_like(xs_scr)
        xs = jnp.sum(x_ref[0].astype(jnp.float32), axis=0, keepdims=True)   # (1, L)
        xs_scr[:, left:left + L] = xs

    # Full-width, lane-aligned window load (TL and the halo are multiples of 128,
    # so no masked partial vector loads).
    base = pl.multiple_of(t * TL, TL)
    win = xs_scr[:, pl.ds(base, W_load)]                    # (1, W_load)
    emb = emb_ref[...].astype(jnp.float32)                  # (H, K)

    # K-tap FIR as K VPU FMAs against statically shifted views of the window.
    # Static lane shifts lower to XLU rotates (free slot); no im2col stack, no MXU.
    acc = emb[:, 0:1] * win[:, 0:TL]
    for k in range(1, K):
        acc = acc + emb[:, k:k + 1] * win[:, k:k + TL]

    o_ref[0] = acc.astype(o_ref.dtype)


def audio_augmentor_forward(X, embedding_weight, in_channels, *, tile_l=8192,
                            out_dtype=None, vmem_budget_bytes=56 * 2**20):
    """Pallas implementation of AudioAugmentor.forward (the `project` path)."""
    B, C, L = X.shape
    assert C == in_channels
    H, K = embedding_weight.shape                 # (num_embeddings, embedding_dim)
    if out_dtype is None:
        # Note: emitting bf16 (~2x less HBM write traffic — the dominant term since
        # H >> C) is a further win on every generation if downstream tolerates it.
        out_dtype = X.dtype

    # PyTorch F.conv1d(padding='same'), stride=1: total pad K-1, extra on the right.
    left = (K - 1) // 2

    # Lane-dense output tile: large tiles amortize the ~0.35us per-grid-step overhead
    # and make each strided per-row output DMA big enough for full DMA efficiency.
    halo = _round_up(K - 1, 128)
    TL = max(128, min(_round_up(tile_l, 128), _round_up(L, 128)))

    def vmem_estimate(tl):
        num_t_ = -(-L // tl)
        w_scr_ = num_t_ * tl + halo
        in_blk = 2 * _round_up(C, 8) * _round_up(L, 128) * X.dtype.itemsize
        scr = 8 * w_scr_ * 4                       # (1, W) rows pad to 8 sublanes
        out_blk = 2 * max(_round_up(H, 8), 8) * tl * jnp.dtype(out_dtype).itemsize
        emb_blk = 2 * _round_up(H, 8) * _round_up(K, 128) * 4
        work = (_round_up(H, 8) * tl + tl + halo) * 4 * 2
        return in_blk + scr + out_blk + emb_blk + work

    # Shrink the tile if the double-buffered output tile would blow the budget
    # (the resident input row / scratch terms do not depend on TL).
    while TL > 512 and vmem_estimate(TL) > vmem_budget_bytes:
        TL = max(512, _round_up(TL // 2, 128))

    num_t = -(-L // TL)
    L_tiled = num_t * TL
    W_scr = L_tiled + halo
    W_load = TL + halo

    # TODO(synk): for very long audio (millions of samples) the resident (1, C, L)
    # row + (1, W_scr) scratch exceed VMEM (64 MiB/TC on v7x); switch the signal
    # input to memory_space=pl.ANY with a manual haloed make_async_copy double-buffer.
    vmem_limit = int(min(max(int(vmem_estimate(TL) * 1.25), 32 * 2**20), 100 * 2**20))

    kernel = functools.partial(_project_kernel, K=K, L=L, TL=TL,
                               W_load=W_load, left=left)

    cost = pl.CostEstimate(
        flops=2 * B * H * K * L + 2 * B * C * L,
        transcendentals=0,
        bytes_accessed=(B * C * L * X.dtype.itemsize
                        + H * K * embedding_weight.dtype.itemsize
                        + B * H * L * jnp.dtype(out_dtype).itemsize))

    return pl.pallas_call(
        kernel,
        out_shape=jax.ShapeDtypeStruct((B, H, L), out_dtype),
        grid=(B, num_t),
        in_specs=[
            # Raw input row resident per batch element: one HBM read of X,
            # no separate channel-sum / pad pass through HBM.
            pl.BlockSpec((1, C, L), lambda b, t: (b, 0, 0)),
            pl.BlockSpec((H, K), lambda b, t: (0, 0)),
        ],
        out_specs=pl.BlockSpec((1, H, TL), lambda b, t: (b, 0, t)),
        scratch_shapes=[pltpu.VMEM((1, W_scr), jnp.float32)],
        compiler_params=pltpu.CompilerParams(
            # b parallel (megacore on v7x needs B >= 2); the L-tile axis carries the
            # scratch row built at t == 0, so it must stay sequential ('arbitrary').
            dimension_semantics=("parallel", "arbitrary"),
            vmem_limit_bytes=vmem_limit,
        ),
        cost_estimate=cost,
    )(X, embedding_weight)


def _reference_forward(X, embedding_weight, in_channels):
    """Pure-JAX reference (== F.conv1d(X, repeated_filters, padding='same'))."""
    H, K = embedding_weight.shape
    C = in_channels
    W = jnp.broadcast_to(embedding_weight[:, None, :], (H, C, K))
    left = (K - 1) // 2
    right = (K - 1) - left
    return jax.lax.conv_general_dilated(
        X, W,
        window_strides=(1,),
        padding=[(left, right)],
        dimension_numbers=("NCH", "OIH", "NCH"),
    )


if __name__ == "__main__":
    # Module hyperparameters (small, consistent with the forward path)
    in_channels = 4
    num_embeddings = 16      # H = out_channels
    embedding_dim = 8        # K = conv kernel size used by project()
    batch = 2

    key = jax.random.PRNGKey(0)
    k_x1, k_x2, k_emb = jax.random.split(key, 3)
    emb_weight = jax.random.normal(
        k_emb, (num_embeddings, embedding_dim), dtype=jnp.float32
    )

    # Case 1: L a multiple of the tile (multi-tile path, unmasked output stores).
    L1 = 1024
    X1 = jax.random.normal(k_x1, (batch, in_channels, L1), dtype=jnp.float32)
    out1 = jax.block_until_ready(
        audio_augmentor_forward(X1, emb_weight, in_channels, tile_l=256)
    )
    ref1 = _reference_forward(X1, emb_weight, in_channels)
    assert out1.shape == (batch, num_embeddings, L1)
    assert jnp.allclose(out1, ref1, atol=1e-4, rtol=1e-4), "mismatch (divisible L)"

    # Case 2: L not a multiple of the tile (exercises the masked partial last tile).
    L2 = 640
    X2 = jax.random.normal(k_x2, (batch, in_channels, L2), dtype=jnp.float32)
    out2 = jax.block_until_ready(
        audio_augmentor_forward(X2, emb_weight, in_channels, tile_l=256)
    )
    ref2 = _reference_forward(X2, emb_weight, in_channels)
    assert out2.shape == (batch, num_embeddings, L2)
    assert jnp.allclose(out2, ref2, atol=1e-4, rtol=1e-4), "mismatch (ragged L)"

    # Case 3: default large tile -> single tile covering the whole row per b.
    out3 = jax.block_until_ready(
        audio_augmentor_forward(X2, emb_weight, in_channels)
    )
    assert jnp.allclose(out3, ref2, atol=1e-4, rtol=1e-4), "mismatch (single tile)"

    # TODO(synk): training-only paths (VectorQuantizer, tokenizer, contrastive /
    # overlap losses) are not part of forward() and are not implemented here.
    print("KERNEL_OK")
</pallas_src>

<mosaic_0001>
module attributes {stable_mosaic.version = 11 : i64} {
  func.func @_project_kernel(%arg0: i32, %arg1: i32, %arg2: memref<1x4x1024xf32, #tpu.memory_space<vmem>>, %arg3: memref<16x8xf32, #tpu.memory_space<vmem>>, %arg4: memref<1x16x256xf32, #tpu.memory_space<vmem>>, %arg5: memref<1x1152xf32, #tpu.memory_space<vmem>>) attributes {dimension_semantics = [#tpu.dimension_semantics<parallel>, #tpu.dimension_semantics<arbitrary>], iteration_bounds = array<i64: 2, 4>, scalar_prefetch = 0 : i64, scratch_operands = 1 : i64, tpu.core_type = #tpu.core_type<tc>, window_params = [{transform_indices = @transform_0, window_bounds = array<i64: 1, 4, 1024>}, {pipeline_mode = #tpu.pipeline_mode<synchronous>, transform_indices = @transform_1, window_bounds = array<i64: 16, 8>}, {transform_indices = @transform_2, window_bounds = array<i64: 1, 16, 256>}]} {
    %c0_i32 = arith.constant 0 : i32
    %0 = arith.cmpi eq, %arg1, %c0_i32 : i32
    %1 = arith.extui %0 : i1 to i32
    %c0_i32_0 = arith.constant 0 : i32
    %2 = arith.cmpi ne, %1, %c0_i32_0 : i32
    scf.if %2 {
      %cst = arith.constant 0.000000e+00 : f32
      %58 = vector.broadcast %cst : f32 to vector<1x1152xf32>
      %c0_6 = arith.constant 0 : index
      %c0_7 = arith.constant 0 : index
      %59 = vector.load %arg5[%c0_6, %c0_7] : memref<1x1152xf32, #tpu.memory_space<vmem>>, vector<1x1152xf32>
      tpu.vector_store %arg5[%c0_6, %c0_7], %58 {strides = array<i32>} : memref<1x1152xf32, #tpu.memory_space<vmem>>, vector<1x1152xf32>,
      %c0_8 = arith.constant 0 : index
      %c0_9 = arith.constant 0 : index
      %c0_10 = arith.constant 0 : index
      %60 = vector.load %arg2[%c0_8, %c0_9, %c0_10] : memref<1x4x1024xf32, #tpu.memory_space<vmem>>, vector<1x4x1024xf32>
      %61 = vector.shape_cast %60 : vector<1x4x1024xf32> to vector<4x1024xf32>
      %cst_11 = arith.constant dense<0.000000e+00> : vector<1024xf32>
      %62 = vector.multi_reduction <add>, %61, %cst_11 [0] : vector<4x1024xf32> to vector<1024xf32>
      %63 = vector.shape_cast %62 : vector<1024xf32> to vector<1x1024xf32>
      %c0_12 = arith.constant 0 : index
      %c3 = arith.constant 3 : index
      %64 = vector.load %arg5[%c0_12, %c3] : memref<1x1152xf32, #tpu.memory_space<vmem>>, vector<1x1024xf32>
      tpu.vector_store %arg5[%c0_12, %c3], %63 {strides = array<i32>} : memref<1x1152xf32, #tpu.memory_space<vmem>>, vector<1x1024xf32>,
    } else {
    }
    %c256_i32 = arith.constant 256 : i32
    %3 = arith.muli %arg1, %c256_i32 : i32
    %4 = tpu.assume_multiple %3, 256 : i32
    %c0 = arith.constant 0 : index
    %5 = arith.index_cast %4 : i32 to index
    %6 = vector.load %arg5[%c0, %5] : memref<1x1152xf32, #tpu.memory_space<vmem>>, vector<1x384xf32>
    %c0_1 = arith.constant 0 : index
    %c0_2 = arith.constant 0 : index
    %7 = vector.load %arg3[%c0_1, %c0_2] : memref<16x8xf32, #tpu.memory_space<vmem>>, vector<16x8xf32>
    %8 = vector.extract_strided_slice %7 {offsets = [0, 0], sizes = [16, 1], strides = [1, 1]} : vector<16x8xf32> to vector<16x1xf32>
    %9 = vector.extract_strided_slice %6 {offsets = [0, 0], sizes = [1, 256], strides = [1, 1]} : vector<1x384xf32> to vector<1x256xf32>
    %10 = vector.broadcast %8 : vector<16x1xf32> to vector<16x256xf32>
    %11 = vector.broadcast %9 : vector<1x256xf32> to vector<16x256xf32>
    %12 = arith.mulf %10, %11 : vector<16x256xf32>
    %13 = vector.extract_strided_slice %7 {offsets = [0, 1], sizes = [16, 1], strides = [1, 1]} : vector<16x8xf32> to vector<16x1xf32>
    %14 = vector.extract_strided_slice %6 {offsets = [0, 1], sizes = [1, 256], strides = [1, 1]} : vector<1x384xf32> to vector<1x256xf32>
    %15 = vector.broadcast %13 : vector<16x1xf32> to vector<16x256xf32>
    %16 = vector.broadcast %14 : vector<1x256xf32> to vector<16x256xf32>
    %17 = arith.mulf %15, %16 : vector<16x256xf32>
    %18 = arith.addf %12, %17 : vector<16x256xf32>
    %19 = vector.extract_strided_slice %7 {offsets = [0, 2], sizes = [16, 1], strides = [1, 1]} : vector<16x8xf32> to vector<16x1xf32>
    %20 = vector.extract_strided_slice %6 {offsets = [0, 2], sizes = [1, 256], strides = [1, 1]} : vector<1x384xf32> to vector<1x256xf32>
    %21 = vector.broadcast %19 : vector<16x1xf32> to vector<16x256xf32>
    %22 = vector.broadcast %20 : vector<1x256xf32> to vector<16x256xf32>
    %23 = arith.mulf %21, %22 : vector<16x256xf32>
    %24 = arith.addf %18, %23 : vector<16x256xf32>
    %25 = vector.extract_strided_slice %7 {offsets = [0, 3], sizes = [16, 1], strides = [1, 1]} : vector<16x8xf32> to vector<16x1xf32>
    %26 = vector.extract_strided_slice %6 {offsets = [0, 3], sizes = [1, 256], strides = [1, 1]} : vector<1x384xf32> to vector<1x256xf32>
    %27 = vector.broadcast %25 : vector<16x1xf32> to vector<16x256xf32>
    %28 = vector.broadcast %26 : vector<1x256xf32> to vector<16x256xf32>
    %29 = arith.mulf %27, %28 : vector<16x256xf32>
    %30 = arith.addf %24, %29 : vector<16x256xf32>
    %31 = vector.extract_strided_slice %7 {offsets = [0, 4], sizes = [16, 1], strides = [1, 1]} : vector<16x8xf32> to vector<16x1xf32>
    %32 = vector.extract_strided_slice %6 {offsets = [0, 4], sizes = [1, 256], strides = [1, 1]} : vector<1x384xf32> to vector<1x256xf32>
    %33 = vector.broadcast %31 : vector<16x1xf32> to vector<16x256xf32>
    %34 = vector.broadcast %32 : vector<1x256xf32> to vector<16x256xf32>
    %35 = arith.mulf %33, %34 : vector<16x256xf32>
    %36 = arith.addf %30, %35 : vector<16x256xf32>
    %37 = vector.extract_strided_slice %7 {offsets = [0, 5], sizes = [16, 1], strides = [1, 1]} : vector<16x8xf32> to vector<16x1xf32>
    %38 = vector.extract_strided_slice %6 {offsets = [0, 5], sizes = [1, 256], strides = [1, 1]} : vector<1x384xf32> to vector<1x256xf32>
    %39 = vector.broadcast %37 : vector<16x1xf32> to vector<16x256xf32>
    %40 = vector.broadcast %38 : vector<1x256xf32> to vector<16x256xf32>
    %41 = arith.mulf %39, %40 : vector<16x256xf32>
    %42 = arith.addf %36, %41 : vector<16x256xf32>
    %43 = vector.extract_strided_slice %7 {offsets = [0, 6], sizes = [16, 1], strides = [1, 1]} : vector<16x8xf32> to vector<16x1xf32>
    %44 = vector.extract_strided_slice %6 {offsets = [0, 6], sizes = [1, 256], strides = [1, 1]} : vector<1x384xf32> to vector<1x256xf32>
    %45 = vector.broadcast %43 : vector<16x1xf32> to vector<16x256xf32>
    %46 = vector.broadcast %44 : vector<1x256xf32> to vector<16x256xf32>
    %47 = arith.mulf %45, %46 : vector<16x256xf32>
    %48 = arith.addf %42, %47 : vector<16x256xf32>
    %49 = vector.extract_strided_slice %7 {offsets = [0, 7], sizes = [16, 1], strides = [1, 1]} : vector<16x8xf32> to vector<16x1xf32>
    %50 = vector.extract_strided_slice %6 {offsets = [0, 7], sizes = [1, 256], strides = [1, 1]} : vector<1x384xf32> to vector<1x256xf32>
    %51 = vector.broadcast %49 : vector<16x1xf32> to vector<16x256xf32>
    %52 = vector.broadcast %50 : vector<1x256xf32> to vector<16x256xf32>
    %53 = arith.mulf %51, %52 : vector<16x256xf32>
    %54 = arith.addf %48, %53 : vector<16x256xf32>
    %c0_3 = arith.constant 0 : index
    %c0_4 = arith.constant 0 : index
    %c0_5 = arith.constant 0 : index
    %55 = vector.load %arg4[%c0_3, %c0_4, %c0_5] : memref<1x16x256xf32, #tpu.memory_space<vmem>>, vector<1x16x256xf32>
    %56 = vector.shape_cast %55 : vector<1x16x256xf32> to vector<16x256xf32>
    %57 = vector.shape_cast %54 : vector<16x256xf32> to vector<1x16x256xf32>
    tpu.vector_store %arg4[%c0_3, %c0_4, %c0_5], %57 {strides = array<i32>} : memref<1x16x256xf32, #tpu.memory_space<vmem>>, vector<1x16x256xf32>,
    return
  }
  func.func @transform_0(%arg0: i32, %arg1: i32) -> (i32, i32, i32) {
    %c0_i32 = arith.constant 0 : i32
    %c0_i32_0 = arith.constant 0 : i32
    %c0_i32_1 = arith.constant 0 : i32
    return %arg0, %c0_i32, %c0_i32_0 : i32, i32, i32
  }
  func.func @transform_1(%arg0: i32, %arg1: i32) -> (i32, i32) {
    %c0_i32 = arith.constant 0 : i32
    %c0_i32_0 = arith.constant 0 : i32
    %c0_i32_1 = arith.constant 0 : i32
    return %c0_i32, %c0_i32_0 : i32, i32
  }
  func.func @transform_2(%arg0: i32, %arg1: i32) -> (i32, i32, i32) {
    %c0_i32 = arith.constant 0 : i32
    %c0_i32_0 = arith.constant 0 : i32
    return %arg0, %c0_i32, %arg1 : i32, i32, i32
  }
}

</mosaic_0001>

<llo_original>
// kernel: tpu_custom_call.1
$region0: #{tpu_custom_call.1}
  #allocation0 [shape = 'u32[]', space=smem, size = 0x4, offset = 0x4, fixed_abs, tag = 'smem constant byte address 0x4 - core index']
  #allocation1 [shape = 'u32[144,128]{1,0:T(1,128)}', space=vmem, size = 0x12000, scoped, tag = 'internal scratch']
  #allocation2 [shape = 'f32[1,1152]{1,0:T(1,128)}', space=vmem, size = 0x1200, scoped, tag = 'scratch operand']
  %s0 = inlined_call_operand.hbm [shape: f32[2,4,1024], index: 0, kind: input, shape index: {}]
  %s1 = inlined_call_operand.vmem [shape: f32[16,8], index: 1, kind: input, shape index: {}]
  %s2 = inlined_call_operand.hbm [shape: f32[2,16,1024], index: 2, kind: output, shape index: {}]
  %s3 = sld [smem:[#allocation0]]
  $region49: #{tpu_custom_call.1} parent=0
    _
  %s5 = ssub.s32 1, %s3
  %s6 = scalar_select 0, %s5, %s3
  $region1: #{tpu_custom_call.1} parent=0
    #allocation3 [shape = 'u8[32768]{0}', space=vmem, size = 0x8000, scoped, tag = 'input window, operand 0']
    #allocation4 [shape = 's32[2]{0}', space=sflag, size = 0x8, scoped, tag = 'scoped memory for tpu_custom_call.1']
    #allocation5 [shape = 's32[2]{0}', space=sflag, size = 0x8, scoped, tag = 'scoped memory for tpu_custom_call.1']
    #allocation6 [shape = 'u8[32768]{0}', space=vmem, size = 0x8000, scoped, tag = 'output window, operand 0']
    %7 = vsyncpa [#allocation4], 0
    %s8 = scalar_lea.sflag [#allocation4], 1
    %9 = vsyncpa %s8, 0
    %10 = vsyncpa [#allocation5], 0
    %s11 = scalar_lea.sflag [#allocation5], 1
    %12 = vsyncpa %s11, 0
    loop: start=0, step=1, limit=10
    $region2: #{tpu_custom_call.1} parent=1 // loop_pre_header
      _
    $region3: #{tpu_custom_call.1} parent=1 // loop_header
      %s14 = sphi 0, %s18
      %p15 = scmp.ge.s32.totalorder %s14, 10
      %s21 = sphi 0, %s33
      %s22 = sphi 0, %s29
      %s23 = sphi 0, %s21
      %s24 = sphi 0, %s22
      %s25 = sphi 0, %s23
      %s26 = sphi 0, %s24
      %s36 = sphi 0, %s38
      %s39 = sphi 0, %s36
      %s40 = sphi 0, %s39
      %s56 = sphi 0, %s40
      %s60 = sphi 0, %s60
      %s62 = sphi 0, %s60
      %s63 = sphi 0, %s62
      %s77 = sphi 0, %s63
      %s85 = sphi 0, %s87
      %s88 = sphi 0, %s85
      %s89 = sphi 0, %s88
      %s105 = sphi 0, %s89
    $region4: #{tpu_custom_call.1} parent=1 // loop_header_branch
      %17 = sbr.rel (%p15) target = $region8
    $region5: #{tpu_custom_call.1} parent=1 // loop_body
      %s19 = ssub.s32 %s14, 1
      %s20 = ssub.s32 %s14, 2
      %s27 = sadd.s32 1, %s22
      %p28 = scmp.ge.s32.totalorder %s27, 4
      %s29 = scalar_select %p28, 0, %s27
      %s30 = sadd.s32 1, %s21
      %s31 = scalar_select %p28, %s30, %s21
      %p32 = scmp.ge.s32.totalorder %s31, 2
      %s33 = scalar_select %p32, 0, %s31
      %s34 = ssub.s32 %s21, %s33
      %p35 = scmp.eq.s32.totalorder %s34, 0
      %s37 = sadd.s32 %s36, 1
      %s38 = scalar_select %p35, %s36, %s37
      %p41 = pneg %p35
      %p42 = scmp.eq.s32.totalorder %s14, 7
      %p43 = por %p41, %p42
      %p44 = scmp.ne.s32.totalorder %s36, %s39
      %p45 = scmp.eq.s32.totalorder %s14, 0
      %p46 = por %p44, %p45
      %p47 = scmp.ne.s32.totalorder %s36, %s39
      %p48 = scmp.eq.s32.totalorder %s19, 7
      %p49 = por %p47, %p48
      %p50 = scmp.ne.s32.totalorder %s39, %s40
      %p51 = scmp.eq.s32.totalorder %s19, 0
      %p52 = por %p50, %p51
      %p53 = scmp.ne.s32.totalorder %s39, %s40
      %p54 = scmp.eq.s32.totalorder %s20, 7
      %p55 = por %p53, %p54
      %p57 = scmp.ne.s32.totalorder %s40, %s56
      %p58 = scmp.eq.s32.totalorder %s20, 0
      %p59 = por %p57, %p58
      %s61 = sadd.s32 %s60, 1
      %p64 = scmp.eq.s32.totalorder %s14, 7
      %p65 = scmp.ne.s32.totalorder %s60, %s62
      %p66 = scmp.eq.s32.totalorder %s14, 0
      %p67 = por %p65, %p66
      %p68 = scmp.ne.s32.totalorder %s60, %s62
      %p69 = scmp.eq.s32.totalorder %s19, 7
      %p70 = por %p68, %p69
      %p71 = scmp.ne.s32.totalorder %s62, %s63
      %p72 = scmp.eq.s32.totalorder %s19, 0
      %p73 = por %p71, %p72
      %p74 = scmp.ne.s32.totalorder %s62, %s63
      %p75 = scmp.eq.s32.totalorder %s20, 7
      %p76 = por %p74, %p75
      %p78 = scmp.ne.s32.totalorder %s63, %s77
      %p79 = scmp.eq.s32.totalorder %s20, 0
      %p80 = por %p78, %p79
      %s81 = ssub.s32 %s21, %s33
      %s82 = ssub.s32 %s22, %s29
      %s83 = sor.u32 %s81, %s82
      %p84 = scmp.eq.s32.totalorder %s83, 0
      %s86 = sadd.s32 %s85, 1
      %s87 = scalar_select %p84, %s85, %s86
      %p90 = pneg %p84
      %p91 = scmp.eq.s32.totalorder %s14, 7
      %p92 = por %p90, %p91
      %p93 = scmp.ne.s32.totalorder %s85, %s88
      %p94 = scmp.eq.s32.totalorder %s14, 0
      %p95 = por %p93, %p94
      %p96 = scmp.ne.s32.totalorder %s85, %s88
      %p97 = scmp.eq.s32.totalorder %s19, 7
      %p98 = por %p96, %p97
      %p99 = scmp.ne.s32.totalorder %s88, %s89
      %p100 = scmp.eq.s32.totalorder %s19, 0
      %p101 = por %p99, %p100
      %p102 = scmp.ne.s32.totalorder %s88, %s89
      %p103 = scmp.eq.s32.totalorder %s20, 7
      %p104 = por %p102, %p103
      %p106 = scmp.ne.s32.totalorder %s89, %s105
      %p107 = scmp.eq.s32.totalorder %s20, 0
      %p108 = por %p106, %p107
      %p109 = scmp.le.s32.totalorder 1, %s14
      %p110 = scmp.lt.s32.totalorder %s14, 9
      %p111 = pnand %p109, %p110
      %p112 = pneg %p111
      // Predicated region
      $region9: #{tpu_custom_call.1} parent=5 // pred_check
        _
      $region10: #{tpu_custom_call.1} parent=5 // pred_check_branch
        %114 = sbr.rel (%p111) target = $region12
      $region11: #{tpu_custom_call.1} parent=5 // pred_region
        %s115 = ssub.s32 %s14, 1
        // Predicated region
        $region13: #{tpu_custom_call.1} parent=11 // pred_check
          %p116 = pneg %p73
        $region14: #{tpu_custom_call.1} parent=11 // pred_check_branch
          %118 = sbr.rel (%p116) target = $region16
        $region15: #{tpu_custom_call.1} parent=11 // pred_region
          _
        $region16: #{tpu_custom_call.1} parent=11 // pred_fallthru
          _
      $region12: #{tpu_custom_call.1} parent=5 // pred_fallthru
        _
      %p119 = scmp.lt.s32.totalorder %s14, 8
      // Predicated region
      $region17: #{tpu_custom_call.1} parent=5 // pred_check
        %p120 = pneg %p119
      $region18: #{tpu_custom_call.1} parent=5 // pred_check_branch
        %122 = sbr.rel (%p120) target = $region20
      $region19: #{tpu_custom_call.1} parent=5 // pred_region
        // Predicated region
        $region21: #{tpu_custom_call.1} parent=19 // pred_check
          %p123 = pneg %p46
        $region22: #{tpu_custom_call.1} parent=19 // pred_check_branch
          %125 = sbr.rel (%p123) target = $region24
        $region23: #{tpu_custom_call.1} parent=19 // pred_region
          %s126 = sand.u32 %s36, 1
          %s127 = scalar_lea.sflag [#allocation4], %s126
          %s128 = sand.u32 %s36, 1
          %s129 = smul.addr %s128, 32
          %s130 = scalar_lea.vmem [#allocation3], %s129
          %s132 = ssub.s32 512, 512
          %133 = vsyncadd %s127, %s132
          %s134 = smul.addr %s21, 8
          %s135 = smul.addr %s134, 64
          %s136 = scalar_lea.hbm %s0, %s135
          %s138 = sshll.u32 %s130, 4
          %s139 = int_to_ptr.vmem [resolvable:$true] %s138
          %141 = dma.hbm_to_vmem [thread:$0]  %s136, 512, %s139, %s127
        $region24: #{tpu_custom_call.1} parent=19 // pred_fallthru
          _
      $region20: #{tpu_custom_call.1} parent=5 // pred_fallthru
        _
      %p142 = scmp.le.s32.totalorder 1, %s14
      %p143 = scmp.lt.s32.totalorder %s14, 9
      %p144 = pnand %p142, %p143
      %p145 = pneg %p144
      // Predicated region
      $region25: #{tpu_custom_call.1} parent=5 // pred_check
        _
      $region26: #{tpu_custom_call.1} parent=5 // pred_check_branch
        %147 = sbr.rel (%p144) target = $region28
      $region27: #{tpu_custom_call.1} parent=5 // pred_region
        %s148 = ssub.s32 %s14, 1
        %s149 = sand.u32 %s39, 1
        %s150 = scalar_lea.sflag [#allocation4], %s149
        %s151 = sand.u32 %s39, 1
        %s152 = smul.addr %s151, 32
        %s153 = scalar_lea.vmem [#allocation3], %s152
        // Predicated region
        $region29: #{tpu_custom_call.1} parent=27 // pred_check
          %p154 = pneg %p52
        $region30: #{tpu_custom_call.1} parent=27 // pred_check_branch
          %156 = sbr.rel (%p154) target = $region32
        $region31: #{tpu_custom_call.1} parent=27 // pred_region
          %157 = dma.done %s150, 512
        $region32: #{tpu_custom_call.1} parent=27 // pred_fallthru
          _
        %s158 = sand.u32 %s39, 1
        %s159 = scalar_lea.sflag [#allocation4], %s158
        %s160 = sand.u32 %s39, 1
        %s161 = smul.addr %s160, 32
        %s162 = scalar_lea.vmem [#allocation3], %s161
        %p163 = pneg %p52
        %p164 = pneg %p49
        %p165 = pneg %p73
        %p166 = pneg %p70
        %p167 = pneg %p101
        %p168 = pneg %p98
        %s169 = sand.u32 %s88, 1
        %s170 = scalar_lea.sflag [#allocation5], %s169
        %s171 = sand.u32 %s88, 1
        %s172 = smul.addr %s171, 32
        %s173 = scalar_lea.vmem [#allocation6], %s172
        %s174 = smul.u32 2, %s24
        %p175 = scmp.eq.s32.totalorder %s24, 0
        // Predicated region
        $region33: #{tpu_custom_call.1} parent=27 // pred_check
          %p176 = pneg %p175
        $region34: #{tpu_custom_call.1} parent=27 // pred_check_branch
          %178 = sbr.rel (%p176) target = $region36
        $region35: #{tpu_custom_call.1} parent=27 // pred_region
          %179 = vst [vmem:[#allocation2] sm:$0xff] 0.0
          %v180 = vlaneseq
          %vm181 = vcmp.ge.s32.totalorder %v180, 0
          %vm182 = vcmp.lt.s32.totalorder %v180, 128
          %vm183 = vmand %vm181, %vm182
          %184 = vst.msk [vmem:[#allocation2 + $0x8] sm:$0x1] %vm183, 0.0
          %v185 = vld [vmem:[%s153] sm:$0xff]
          %v186 = vld [vmem:[%s153 + $0x8] sm:$0xff]
          %v187 = vld [vmem:[%s153 + $0x10] sm:$0xff]
          %v188 = vld [vmem:[%s153 + $0x18] sm:$0xff]
          %v193 = vcombine.high %v185, %v185
          %v194 = vcombine.high %v186, %v186
          %v195 = vcombine.high %v187, %v187
          %v196 = vcombine.high %v188, %v188
          %vm201 = vcmask 1043456
          %v202 = vsel %vm201, %v185, 0.0
          %v203 = vrot.slane %v202, 4
          %v204 = vadd.f32 %v202, %v203
          %v205 = vrot.slane %v204, 2
          %v206 = vadd.f32 %v204, %v205
          %v207 = vrot.slane %v206, 1
          %v208 = vadd.f32 %v206, %v207
          %v209 = vsel %vm201, %v193, 0.0
          %v210 = vrot.slane %v209, 4
          %v211 = vadd.f32 %v209, %v210
          %v212 = vrot.slane %v211, 2
          %v213 = vadd.f32 %v211, %v212
          %v214 = vrot.slane %v213, 1
          %v215 = vadd.f32 %v213, %v214
          %v216 = vsel %vm201, %v186, 0.0
          %v217 = vrot.slane %v216, 4
          %v218 = vadd.f32 %v216, %v217
          %v219 = vrot.slane %v218, 2
          %v220 = vadd.f32 %v218, %v219
          %v221 = vrot.slane %v220, 1
          %v222 = vadd.f32 %v220, %v221
          %v223 = vsel %vm201, %v194, 0.0
          %v224 = vrot.slane %v223, 4
          %v225 = vadd.f32 %v223, %v224
          %v226 = vrot.slane %v225, 2
          %v227 = vadd.f32 %v225, %v226
          %v228 = vrot.slane %v227, 1
          %v229 = vadd.f32 %v227, %v228
          %v230 = vsel %vm201, %v187, 0.0
          %v231 = vrot.slane %v230, 4
          %v232 = vadd.f32 %v230, %v231
          %v233 = vrot.slane %v232, 2
          %v234 = vadd.f32 %v232, %v233
          %v235 = vrot.slane %v234, 1
          %v236 = vadd.f32 %v234, %v235
          %v237 = vsel %vm201, %v195, 0.0
          %v238 = vrot.slane %v237, 4
          %v239 = vadd.f32 %v237, %v238
          %v240 = vrot.slane %v239, 2
          %v241 = vadd.f32 %v239, %v240
          %v242 = vrot.slane %v241, 1
          %v243 = vadd.f32 %v241, %v242
          %v244 = vsel %vm201, %v188, 0.0
          %v245 = vrot.slane %v244, 4
          %v246 = vadd.f32 %v244, %v245
          %v247 = vrot.slane %v246, 2
          %v248 = vadd.f32 %v246, %v247
          %v249 = vrot.slane %v248, 1
          %v250 = vadd.f32 %v248, %v249
          %v251 = vsel %vm201, %v196, 0.0
          %v252 = vrot.slane %v251, 4
          %v253 = vadd.f32 %v251, %v252
          %v254 = vrot.slane %v253, 2
          %v255 = vadd.f32 %v253, %v254
          %v256 = vrot.slane %v255, 1
          %v257 = vadd.f32 %v255, %v256
          %v266 = vcombine.low %v208, %v215
          %v267 = vcombine.low %v222, %v229
          %v268 = vcombine.low %v236, %v243
          %v269 = vcombine.low %v250, %v257
          %v271 = vunpack.c.l.s4 1966171168
          %v272 = vunpack.c.0.s8 %v271
          %v273 = vlaneseq
          %v274 = vshrl.u32 %v273, 7
          %v275 = vsub.s32 %v272, %v274
          %v276 = vrot.slane %v266, %v275
          %v278 = vunpack.c.l.s4 1966171168
          %v279 = vunpack.c.0.s8 %v278
          %v280 = vlaneseq
          %v281 = vshrl.u32 %v280, 7
          %v282 = vsub.s32 %v279, %v281
          %v283 = vrot.slane %v267, %v282
          %v285 = vunpack.c.l.s4 1966171168
          %v286 = vunpack.c.0.s8 %v285
          %v287 = vlaneseq
          %v288 = vshrl.u32 %v287, 7
          %v289 = vsub.s32 %v286, %v288
          %v290 = vrot.slane %v268, %v289
          %v292 = vunpack.c.l.s4 1966171168
          %v293 = vunpack.c.0.s8 %v292
          %v294 = vlaneseq
          %v295 = vshrl.u32 %v294, 7
          %v296 = vsub.s32 %v293, %v295
          %v297 = vrot.slane %v269, %v296
          %v298 = vcombine.low %v276, %v283
          %v299 = vcombine.low %v290, %v297
          %v301 = vunpack.c.l.s4 1966171168
          %v302 = vunpack.c.0.s8 %v301
          %v303 = vlaneseq
          %v304 = vshrl.u32 %v303, 7
          %v305 = vsub.s32 %v302, %v304
          %v306 = vrot.slane %v298, %v305
          %v308 = vunpack.c.l.s4 1966171168
          %v309 = vunpack.c.0.s8 %v308
          %v310 = vlaneseq
          %v311 = vshrl.u32 %v310, 7
          %v312 = vsub.s32 %v309, %v311
          %v313 = vrot.slane %v299, %v312
          %v314 = vcombine.low %v306, %v313
          %315 = vrot.lane.b32.xlu0 %v314, 3
          %v316 = vpop.permute.xlu0 %315
          %v317 = vrot.slane %v316, 7
          %vm318 = vcmask 23552
          %v319 = vsel %vm318, %v317, %v316
          %vm322 = vcmp.ge.s32.totalorder %v180, 3
          %vm323 = vcmp.lt.s32.totalorder %v180, 1024
          %vm324 = vmand %vm322, %vm323
          %325 = vst.msk [vmem:[#allocation2] sm:$0xff] %vm324, %v319
          %vm326 = vcmp.lt.s32.totalorder %v180, 3
          %vm327 = vmand %vm181, %vm326
          %328 = vst.msk [vmem:[#allocation2 + $0x8] sm:$0x1] %vm327, %v317
        $region36: #{tpu_custom_call.1} parent=27 // pred_fallthru
          _
        %s329 = smul.u32 %s24, 256
        %s330 = sshra.s32 %s329, 7
        %s331 = sand.u32 %s329, 127
        %s332 = scalar_lea.vmem [#allocation2], %s330
        %v333 = vld [vmem:[%s332] sm:$0x7]
        %v334 = vld [vmem:[%s1] sm:$0xff]
        %v335 = vld [vmem:[%s1 + $0x8] sm:$0xff]
        %337 = vset.pattern.permute.xlu0 0
        %338 = vperm.xlu0 %337, %v334
        %v339 = vpop.permute.xlu0 %338
        %342 = vset.pattern.permute.xlu0 0
        %343 = vperm.xlu0 %342, %v335
        %v344 = vpop.permute.xlu0 %343
        %v347 = vlaneseq
        %v348 = vshrl.u32 %v347, 7
        %v349 = vsub.s32 0, %v348
        %v350 = vrot.slane %v333, %v349
        %v351 = vlaneseq
        %v352 = vshrl.u32 %v351, 7
        %v353 = vsub.s32 1, %v352
        %v354 = vrot.slane %v333, %v353
        %v357 = vmul.f32 %v339, %v350
        %v358 = vmul.f32 %v339, %v354
        %v359 = vmul.f32 %v344, %v350
        %v360 = vmul.f32 %v344, %v354
        %361 = vset.pattern.permute.xlu0 1
        %362 = vperm.xlu0 %361, %v334
        %v363 = vpop.permute.xlu0 %362
        %365 = vset.pattern.permute.xlu0 1
        %366 = vperm.xlu0 %365, %v335
        %v367 = vpop.permute.xlu0 %366
        %v369 = vlaneseq
        %v370 = vshrl.u32 %v369, 7
        %v371 = vsub.s32 2, %v370
        %v372 = vrot.slane %v333, %v371
        %v374 = vmul.f32 %v363, %v350
        %v375 = vmul.f32 %v363, %v354
        %v376 = vmul.f32 %v363, %v372
        %v377 = vmul.f32 %v367, %v350
        %v378 = vmul.f32 %v367, %v354
        %v379 = vmul.f32 %v367, %v372
        %386 = vrot.lane.b32.xlu0 %v374, 127
        %v387 = vpop.permute.xlu0 %386
        %388 = vrot.lane.b32.xlu0 %v375, 127
        %v389 = vpop.permute.xlu0 %388
        %390 = vrot.lane.b32.xlu0 %v376, 127
        %v391 = vpop.permute.xlu0 %390
        %392 = vrot.lane.b32.xlu0 %v377, 127
        %v393 = vpop.permute.xlu0 %392
        %394 = vrot.lane.b32.xlu0 %v378, 127
        %v395 = vpop.permute.xlu0 %394
        %396 = vrot.lane.b32.xlu0 %v379, 127
        %v397 = vpop.permute.xlu0 %396
        %vm398 = vcmask 1039360
        %v399 = vsel %vm398, %v387, %v389
        %v400 = vsel %vm398, %v389, %v391
        %v401 = vsel %vm398, %v393, %v395
        %v402 = vsel %vm398, %v395, %v397
        %v407 = vadd.f32 %v357, %v399
        %v408 = vadd.f32 %v358, %v400
        %v409 = vadd.f32 %v359, %v401
        %v410 = vadd.f32 %v360, %v402
        %411 = vset.pattern.permute.xlu0 2
        %412 = vperm.xlu0 %411, %v334
        %v413 = vpop.permute.xlu0 %412
        %415 = vset.pattern.permute.xlu0 2
        %416 = vperm.xlu0 %415, %v335
        %v417 = vpop.permute.xlu0 %416
        %v419 = vmul.f32 %v413, %v350
        %v420 = vmul.f32 %v413, %v354
        %v421 = vmul.f32 %v413, %v372
        %v422 = vmul.f32 %v417, %v350
        %v423 = vmul.f32 %v417, %v354
        %v424 = vmul.f32 %v417, %v372
        %431 = vrot.lane.b32.xlu0 %v419, 126
        %v432 = vpop.permute.xlu0 %431
        %433 = vrot.lane.b32.xlu0 %v420, 126
        %v434 = vpop.permute.xlu0 %433
        %435 = vrot.lane.b32.xlu0 %v421, 126
        %v436 = vpop.permute.xlu0 %435
        %437 = vrot.lane.b32.xlu0 %v422, 126
        %v438 = vpop.permute.xlu0 %437
        %439 = vrot.lane.b32.xlu0 %v423, 126
        %v440 = vpop.permute.xlu0 %439
        %441 = vrot.lane.b32.xlu0 %v424, 126
        %v442 = vpop.permute.xlu0 %441
        %vm443 = vcmask 1031168
        %v444 = vsel %vm443, %v432, %v434
        %v445 = vsel %vm443, %v434, %v436
        %v446 = vsel %vm443, %v438, %v440
        %v447 = vsel %vm443, %v440, %v442
        %v452 = vadd.f32 %v407, %v444
        %v453 = vadd.f32 %v408, %v445
        %v454 = vadd.f32 %v409, %v446
        %v455 = vadd.f32 %v410, %v447
        %456 = vset.pattern.permute.xlu0 3
        %457 = vperm.xlu0 %456, %v334
        %v458 = vpop.permute.xlu0 %457
        %460 = vset.pattern.permute.xlu0 3
        %461 = vperm.xlu0 %460, %v335
        %v462 = vpop.permute.xlu0 %461
        %v464 = vmul.f32 %v458, %v350
        %v465 = vmul.f32 %v458, %v354
        %v466 = vmul.f32 %v458, %v372
        %v467 = vmul.f32 %v462, %v350
        %v468 = vmul.f32 %v462, %v354
        %v469 = vmul.f32 %v462, %v372
        %476 = vrot.lane.b32.xlu0 %v464, 125
        %v477 = vpop.permute.xlu0 %476
        %478 = vrot.lane.b32.xlu0 %v465, 125
        %v479 = vpop.permute.xlu0 %478
        %480 = vrot.lane.b32.xlu0 %v466, 125
        %v481 = vpop.permute.xlu0 %480
        %482 = vrot.lane.b32.xlu0 %v467, 125
        %v483 = vpop.permute.xlu0 %482
        %484 = vrot.lane.b32.xlu0 %v468, 125
        %v485 = vpop.permute.xlu0 %484
        %486 = vrot.lane.b32.xlu0 %v469, 125
        %v487 = vpop.permute.xlu0 %486
        %vm488 = vcmask 1022976
        %v489 = vsel %vm488, %v477, %v479
        %v490 = vsel %vm488, %v479, %v481
        %v491 = vsel %vm488, %v483, %v485
        %v492 = vsel %vm488, %v485, %v487
        %v497 = vadd.f32 %v452, %v489
        %v498 = vadd.f32 %v453, %v490
        %v499 = vadd.f32 %v454, %v491
        %v500 = vadd.f32 %v455, %v492
        %501 = vset.pattern.permute.xlu0 4
        %502 = vperm.xlu0 %501, %v334
        %v503 = vpop.permute.xlu0 %502
        %505 = vset.pattern.permute.xlu0 4
        %506 = vperm.xlu0 %505, %v335
        %v507 = vpop.permute.xlu0 %506
        %v509 = vmul.f32 %v503, %v350
        %v510 = vmul.f32 %v503, %v354
        %v511 = vmul.f32 %v503, %v372
        %v512 = vmul.f32 %v507, %v350
        %v513 = vmul.f32 %v507, %v354
        %v514 = vmul.f32 %v507, %v372
        %521 = vrot.lane.b32.xlu0 %v509, 124
        %v522 = vpop.permute.xlu0 %521
        %523 = vrot.lane.b32.xlu0 %v510, 124
        %v524 = vpop.permute.xlu0 %523
        %525 = vrot.lane.b32.xlu0 %v511, 124
        %v526 = vpop.permute.xlu0 %525
        %527 = vrot.lane.b32.xlu0 %v512, 124
        %v528 = vpop.permute.xlu0 %527
        %529 = vrot.lane.b32.xlu0 %v513, 124
        %v530 = vpop.permute.xlu0 %529
        %531 = vrot.lane.b32.xlu0 %v514, 124
        %v532 = vpop.permute.xlu0 %531
        %vm533 = vcmask 1014784
        %v534 = vsel %vm533, %v522, %v524
        %v535 = vsel %vm533, %v524, %v526
        %v536 = vsel %vm533, %v528, %v530
        %v537 = vsel %vm533, %v530, %v532
        %v542 = vadd.f32 %v497, %v534
        %v543 = vadd.f32 %v498, %v535
        %v544 = vadd.f32 %v499, %v536
        %v545 = vadd.f32 %v500, %v537
        %546 = vset.pattern.permute.xlu0 5
        %547 = vperm.xlu0 %546, %v334
        %v548 = vpop.permute.xlu0 %547
        %550 = vset.pattern.permute.xlu0 5
        %551 = vperm.xlu0 %550, %v335
        %v552 = vpop.permute.xlu0 %551
        %v554 = vmul.f32 %v548, %v350
        %v555 = vmul.f32 %v548, %v354
        %v556 = vmul.f32 %v548, %v372
        %v557 = vmul.f32 %v552, %v350
        %v558 = vmul.f32 %v552, %v354
        %v559 = vmul.f32 %v552, %v372
        %566 = vrot.lane.b32.xlu0 %v554, 123
        %v567 = vpop.permute.xlu0 %566
        %568 = vrot.lane.b32.xlu0 %v555, 123
        %v569 = vpop.permute.xlu0 %568
        %570 = vrot.lane.b32.xlu0 %v556, 123
        %v571 = vpop.permute.xlu0 %570
        %572 = vrot.lane.b32.xlu0 %v557, 123
        %v573 = vpop.permute.xlu0 %572
        %574 = vrot.lane.b32.xlu0 %v558, 123
        %v575 = vpop.permute.xlu0 %574
        %576 = vrot.lane.b32.xlu0 %v559, 123
        %v577 = vpop.permute.xlu0 %576
        %vm578 = vcmask 1006592
        %v579 = vsel %vm578, %v567, %v569
        %v580 = vsel %vm578, %v569, %v571
        %v581 = vsel %vm578, %v573, %v575
        %v582 = vsel %vm578, %v575, %v577
        %v587 = vadd.f32 %v542, %v579
        %v588 = vadd.f32 %v543, %v580
        %v589 = vadd.f32 %v544, %v581
        %v590 = vadd.f32 %v545, %v582
        %591 = vset.pattern.permute.xlu0 6
        %592 = vperm.xlu0 %591, %v334
        %v593 = vpop.permute.xlu0 %592
        %595 = vset.pattern.permute.xlu0 6
        %596 = vperm.xlu0 %595, %v335
        %v597 = vpop.permute.xlu0 %596
        %v599 = vmul.f32 %v593, %v350
        %v600 = vmul.f32 %v593, %v354
        %v601 = vmul.f32 %v593, %v372
        %v602 = vmul.f32 %v597, %v350
        %v603 = vmul.f32 %v597, %v354
        %v604 = vmul.f32 %v597, %v372
        %611 = vrot.lane.b32.xlu0 %v599, 122
        %v612 = vpop.permute.xlu0 %611
        %613 = vrot.lane.b32.xlu0 %v600, 122
        %v614 = vpop.permute.xlu0 %613
        %615 = vrot.lane.b32.xlu0 %v601, 122
        %v616 = vpop.permute.xlu0 %615
        %617 = vrot.lane.b32.xlu0 %v602, 122
        %v618 = vpop.permute.xlu0 %617
        %619 = vrot.lane.b32.xlu0 %v603, 122
        %v620 = vpop.permute.xlu0 %619
        %621 = vrot.lane.b32.xlu0 %v604, 122
        %v622 = vpop.permute.xlu0 %621
        %vm623 = vcmask 998400
        %v624 = vsel %vm623, %v612, %v614
        %v625 = vsel %vm623, %v614, %v616
        %v626 = vsel %vm623, %v618, %v620
        %v627 = vsel %vm623, %v620, %v622
        %v632 = vadd.f32 %v587, %v624
        %v633 = vadd.f32 %v588, %v625
        %v634 = vadd.f32 %v589, %v626
        %v635 = vadd.f32 %v590, %v627
        %636 = vset.pattern.permute.xlu0 7
        %637 = vperm.xlu0 %636, %v334
        %v638 = vpop.permute.xlu0 %637
        %640 = vset.pattern.permute.xlu0 7
        %641 = vperm.xlu0 %640, %v335
        %v642 = vpop.permute.xlu0 %641
        %v644 = vmul.f32 %v638, %v350
        %v645 = vmul.f32 %v638, %v354
        %v646 = vmul.f32 %v638, %v372
        %v647 = vmul.f32 %v642, %v350
        %v648 = vmul.f32 %v642, %v354
        %v649 = vmul.f32 %v642, %v372
        %656 = vrot.lane.b32.xlu0 %v644, 121
        %v657 = vpop.permute.xlu0 %656
        %658 = vrot.lane.b32.xlu0 %v645, 121
        %v659 = vpop.permute.xlu0 %658
        %660 = vrot.lane.b32.xlu0 %v646, 121
        %v661 = vpop.permute.xlu0 %660
        %662 = vrot.lane.b32.xlu0 %v647, 121
        %v663 = vpop.permute.xlu0 %662
        %664 = vrot.lane.b32.xlu0 %v648, 121
        %v665 = vpop.permute.xlu0 %664
        %666 = vrot.lane.b32.xlu0 %v649, 121
        %v667 = vpop.permute.xlu0 %666
        %vm668 = vcmask 990208
        %v669 = vsel %vm668, %v657, %v659
        %v670 = vsel %vm668, %v659, %v661
        %v671 = vsel %vm668, %v663, %v665
        %v672 = vsel %vm668, %v665, %v667
        %v677 = vadd.f32 %v632, %v669
        %v678 = vadd.f32 %v633, %v670
        %v679 = vadd.f32 %v634, %v671
        %v680 = vadd.f32 %v635, %v672
        %681 = vst [vmem:[%s173] sm:$0xff] %v677
        %682 = vst [vmem:[%s173 + $0x8] sm:$0xff] %v678
        %683 = vst [vmem:[%s173 + $0x10] sm:$0xff] %v679
        %684 = vst [vmem:[%s173 + $0x18] sm:$0xff] %v680
        %s685 = sand.u32 %s88, 1
        %s686 = scalar_lea.sflag [#allocation5], %s685
        %s687 = sand.u32 %s88, 1
        %s688 = smul.addr %s687, 32
        %s689 = scalar_lea.vmem [#allocation6], %s688
        // Predicated region
        $region37: #{tpu_custom_call.1} parent=27 // pred_check
          %p690 = pneg %p98
        $region38: #{tpu_custom_call.1} parent=27 // pred_check_branch
          %692 = sbr.rel (%p690) target = $region40
        $region39: #{tpu_custom_call.1} parent=27 // pred_region
          %s693 = smul.u32 2, %s24
          %s695 = ssub.s32 512, 512
          %696 = vsyncadd %s686, %s695
          %s697 = smul.addr %s23, 16
          %s698 = sadd.s32 %s693, %s697
          %s699 = smul.addr %s698, 128
          %s700 = scalar_lea.hbm %s2, %s699
          %s701 = sshll.u32 %s689, 4
          %s702 = int_to_ptr.vmem [resolvable:$true] %s701
          %707 = dma.vmem_to_hbm [thread:$0]  %s702, 512, %s700, %s686, 256, 1024, 16
        $region40: #{tpu_custom_call.1} parent=27 // pred_fallthru
          _
      $region28: #{tpu_custom_call.1} parent=5 // pred_fallthru
        _
      %p708 = scmp.le.s32.totalorder 2, %s14
      // Predicated region
      $region41: #{tpu_custom_call.1} parent=5 // pred_check
        %p709 = pneg %p708
      $region42: #{tpu_custom_call.1} parent=5 // pred_check_branch
        %711 = sbr.rel (%p709) target = $region44
      $region43: #{tpu_custom_call.1} parent=5 // pred_region
        %s712 = ssub.s32 %s14, 2
        // Predicated region
        $region45: #{tpu_custom_call.1} parent=43 // pred_check
          %p713 = pneg %p104
        $region46: #{tpu_custom_call.1} parent=43 // pred_check_branch
          %715 = sbr.rel (%p713) target = $region48
        $region47: #{tpu_custom_call.1} parent=43 // pred_region
          %s716 = sand.u32 %s89, 1
          %s717 = scalar_lea.sflag [#allocation5], %s716
          %s718 = sand.u32 %s89, 1
          %s719 = smul.addr %s718, 32
          %s720 = scalar_lea.vmem [#allocation6], %s719
          %721 = dma.done %s717, 512
        $region48: #{tpu_custom_call.1} parent=43 // pred_fallthru
          _
      $region44: #{tpu_custom_call.1} parent=5 // pred_fallthru
        _
    $region6: #{tpu_custom_call.1} parent=1 // loop_footer
      %s18 = sadd.s32 1, %s14
    $region7: #{tpu_custom_call.1} parent=1 // loop_footer_branch
      %13 = sbr.rel target = $region3
    $region8: #{tpu_custom_call.1} parent=1 // loop_exit
      _
    %722 = vsyncpa [#allocation4], 1
    %s723 = scalar_lea.sflag [#allocation4], 1
    %724 = vsyncpa %s723, 1
    %725 = vsyncpa [#allocation5], 1
    %s726 = scalar_lea.sflag [#allocation5], 1
    %727 = vsyncpa %s726, 1

</llo_original>
